<compile_context>
chip_gen: v7x
topology: tpu7x:2x2x1
jax: 0.10.0
libtpu: 0.0.40
codegen_flags: <defaults>
</compile_context>

<pallas_src>
import functools

import jax
import jax.numpy as jnp
from jax.experimental import pallas as pl
from jax.experimental.pallas import tpu as pltpu


def _round_up(x, m):
    return (x + m - 1) // m * m


def _proxy_anchor_kernel(
    x_ref,      # (B, D)      f32  VMEM, grid-invariant
    p_ref,      # (TILE_C, D) f32  VMEM, one class tile per grid step
    t_ref,      # (B, 1)      i32  VMEM, grid-invariant labels
    out_ref,    # (1, 1)      f32  SMEM output (written on last step)
    xn_ref,     # (B, D)      f32  VMEM scratch: normalized X (computed once)
    acc_ref,    # (3,)        f32  SMEM scratch: [pos_log_sum, neg_log_sum, num_valid]
    *,
    nb_classes,
    mrg,
    alpha,
    tile_c,
):
    c_idx = pl.program_id(0)

    # ---- step 0: normalize X once, zero the accumulators -------------------
    @pl.when(c_idx == 0)
    def _init():
        x = x_ref[...].astype(jnp.float32)
        xn_ref[...] = x * jax.lax.rsqrt(
            jnp.sum(x * x, axis=1, keepdims=True) + 1e-12
        )
        acc_ref[0] = 0.0
        acc_ref[1] = 0.0
        acc_ref[2] = 0.0

    x_norm = xn_ref[...]                                   # (B, D)

    # ---- normalize this proxy tile (rsqrt) ----------------------------------
    p = p_ref[...].astype(jnp.float32)                     # (TILE_C, D)
    p_norm = p * jax.lax.rsqrt(jnp.sum(p * p, axis=1, keepdims=True) + 1e-12)

    # ---- cosine similarities: contract last dims (no transpose) -------------
    cos = jax.lax.dot_general(
        x_norm, p_norm, (((1,), (1,)), ((), ())),
        preferred_element_type=jnp.float32,
    )                                                      # (B, TILE_C)

    b, tc = cos.shape
    local_ids = jax.lax.broadcasted_iota(jnp.int32, (b, tc), 1)
    class_ids = local_ids + c_idx * tile_c                 # global class ids
    t = t_ref[...]                                         # (B, 1) int32
    mask = class_ids == t                                  # (B, TILE_C) bool
    valid = class_ids < nb_classes                         # mask out C padding

    # ---- positive term: one positive cos per row -> (B,1) exp only ---------
    pos_cos = jnp.sum(jnp.where(mask, cos, 0.0), axis=1, keepdims=True)  # (B,1)
    pos_exp_row = jnp.exp(-alpha * (pos_cos - mrg))                       # (B,1)
    p_sim_sum = jnp.sum(jnp.where(mask, pos_exp_row, 0.0), axis=0)        # (TILE_C,)

    # ---- negative term: single full-tile exp --------------------------------
    neg_exp = jnp.exp(alpha * (cos + mrg))                                # (B,TILE_C)
    neg_mask = jnp.logical_and(jnp.logical_not(mask), valid)
    n_sim_sum = jnp.sum(jnp.where(neg_mask, neg_exp, 0.0), axis=0)        # (TILE_C,)

    # ---- proxies with at least one positive in the batch --------------------
    has_pos = (jnp.sum(mask.astype(jnp.float32), axis=0) > 0.0).astype(jnp.float32)

    # ---- accumulate per-tile scalar contributions ---------------------------
    acc_ref[0] = acc_ref[0] + jnp.sum(jnp.log(1.0 + p_sim_sum))
    acc_ref[1] = acc_ref[1] + jnp.sum(jnp.log(1.0 + n_sim_sum))
    acc_ref[2] = acc_ref[2] + jnp.sum(has_pos)

    # ---- finalize on the last class tile ------------------------------------
    @pl.when(c_idx == pl.num_programs(0) - 1)
    def _final():
        out_ref[0, 0] = acc_ref[0] / acc_ref[2] + acc_ref[1] / float(nb_classes)


def proxy_anchor_loss(x, proxies, t, *, nb_classes, mrg=0.1, alpha=32.0, tile_c=256):
    """x: (B, D) float32, proxies: (C, D) float32, t: (B,) int labels."""
    x = x.astype(jnp.float32)
    proxies = proxies.astype(jnp.float32)
    b, d = x.shape
    c = proxies.shape[0]

    # Tile size: multiple of 8 (sublane), capped by the (padded) class count.
    tile_c = min(int(tile_c), _round_up(c, 8))
    tile_c = _round_up(tile_c, 8)
    c_pad = _round_up(c, tile_c)
    if c_pad != c:
        proxies = jnp.pad(proxies, ((0, c_pad - c), (0, 0)))
    num_tiles = c_pad // tile_c

    t2d = t.astype(jnp.int32).reshape(-1, 1)

    kernel = functools.partial(
        _proxy_anchor_kernel,
        nb_classes=int(nb_classes),
        mrg=float(mrg),
        alpha=float(alpha),
        tile_c=int(tile_c),
    )

    out = pl.pallas_call(
        kernel,
        out_shape=jax.ShapeDtypeStruct((1, 1), jnp.float32),
        grid=(num_tiles,),
        in_specs=[
            pl.BlockSpec((b, d), lambda ci: (0, 0)),            # X (grid-invariant)
            pl.BlockSpec((tile_c, d), lambda ci: (ci, 0)),       # proxy tile
            pl.BlockSpec((b, 1), lambda ci: (0, 0)),             # labels
        ],
        out_specs=pl.BlockSpec(
            (1, 1), lambda ci: (0, 0), memory_space=pltpu.SMEM
        ),
        scratch_shapes=[
            pltpu.VMEM((b, d), jnp.float32),   # normalized X
            pltpu.SMEM((3,), jnp.float32),     # [pos_log_sum, neg_log_sum, num_valid]
        ],
        compiler_params=pltpu.CompilerParams(
            dimension_semantics=("arbitrary",),
        ),
    )(x, proxies, t2d)
    return out[0, 0]


def _reference_loss(x, proxies, t, *, nb_classes, mrg=0.1, alpha=32.0):
    """Pure-JAX reference (mirrors the PyTorch forward) for sanity checking."""
    xn = x / jnp.sqrt(jnp.sum(x * x, axis=1, keepdims=True) + 1e-12)
    pn = proxies / jnp.sqrt(jnp.sum(proxies * proxies, axis=1, keepdims=True) + 1e-12)
    cos = xn @ pn.T
    one_hot = jax.nn.one_hot(t, nb_classes, dtype=jnp.float32)
    pos_exp = jnp.exp(-alpha * (cos - mrg))
    neg_exp = jnp.exp(alpha * (cos + mrg))
    num_valid = jnp.sum((jnp.sum(one_hot, axis=0) != 0).astype(jnp.float32))
    p_sim = jnp.sum(jnp.where(one_hot == 1, pos_exp, 0.0), axis=0)
    n_sim = jnp.sum(jnp.where(one_hot == 0, neg_exp, 0.0), axis=0)
    return (
        jnp.sum(jnp.log(1 + p_sim)) / num_valid
        + jnp.sum(jnp.log(1 + n_sim)) / nb_classes
    )


if __name__ == "__main__":
    nb_classes = 40          # not a multiple of tile_c -> exercises padding path
    sz_embed = 32
    batch = 8
    mrg = 0.1
    alpha = 32.0
    tile_c = 16              # small tile so the grid has several steps

    key = jax.random.PRNGKey(0)
    kx, kp, kt = jax.random.split(key, 3)

    # Deterministic parameter init: kaiming_normal_(mode='fan_out') on
    # (nb_classes, sz_embed) -> std = sqrt(2 / nb_classes).
    proxies = jax.random.normal(kp, (nb_classes, sz_embed), jnp.float32) * jnp.sqrt(
        2.0 / nb_classes
    )
    x = jax.random.normal(kx, (batch, sz_embed), jnp.float32)
    t = jax.random.randint(kt, (batch,), 0, nb_classes, jnp.int32)

    loss = proxy_anchor_loss(
        x, proxies, t, nb_classes=nb_classes, mrg=mrg, alpha=alpha, tile_c=tile_c
    )
    loss = jax.block_until_ready(loss)

    ref = _reference_loss(x, proxies, t, nb_classes=nb_classes, mrg=mrg, alpha=alpha)
    assert jnp.allclose(loss, ref, rtol=1e-4, atol=1e-4), (loss, ref)

    print("KERNEL_OK")
</pallas_src>

<mosaic_0001>
module attributes {stable_mosaic.version = 11 : i64} {
  func.func @_proxy_anchor_kernel(%arg0: i32, %arg1: memref<8x32xf32, #tpu.memory_space<vmem>>, %arg2: memref<16x32xf32, #tpu.memory_space<vmem>>, %arg3: memref<8x1xi32, #tpu.memory_space<vmem>>, %arg4: memref<1x1xf32, #tpu.memory_space<smem>>, %arg5: memref<8x32xf32, #tpu.memory_space<vmem>>, %arg6: memref<3xf32, #tpu.memory_space<smem>>) attributes {dimension_semantics = [#tpu.dimension_semantics<arbitrary>], iteration_bounds = array<i64: 3>, scalar_prefetch = 0 : i64, scratch_operands = 2 : i64, tpu.core_type = #tpu.core_type<tc>, window_params = [{pipeline_mode = #tpu.pipeline_mode<synchronous>, transform_indices = @transform_0, window_bounds = array<i64: 8, 32>}, {transform_indices = @transform_1, window_bounds = array<i64: 16, 32>}, {pipeline_mode = #tpu.pipeline_mode<synchronous>, transform_indices = @transform_2, window_bounds = array<i64: 8, 1>}, {transform_indices = @transform_3, window_bounds = array<i64: 1, 1>}]} {
    %c0_i32 = arith.constant 0 : i32
    %0 = arith.cmpi eq, %arg0, %c0_i32 : i32
    %1 = arith.extui %0 : i1 to i32
    %c0_i32_0 = arith.constant 0 : i32
    %2 = arith.cmpi ne, %1, %c0_i32_0 : i32
    scf.if %2 {
      %c0_31 = arith.constant 0 : index
      %c0_32 = arith.constant 0 : index
      %84 = vector.load %arg1[%c0_31, %c0_32] : memref<8x32xf32, #tpu.memory_space<vmem>>, vector<8x32xf32>
      %85 = arith.mulf %84, %84 : vector<8x32xf32>
      %cst_33 = arith.constant dense<0.000000e+00> : vector<8xf32>
      %86 = vector.multi_reduction <add>, %85, %cst_33 [1] : vector<8x32xf32> to vector<8xf32>
      %87 = vector.shape_cast %86 : vector<8xf32> to vector<8x1xf32>
      %cst_34 = arith.constant 9.99999996E-13 : f32
      %88 = vector.broadcast %cst_34 : f32 to vector<8x1xf32>
      %89 = arith.addf %87, %88 : vector<8x1xf32>
      %90 = math.rsqrt %89 : vector<8x1xf32>
      %91 = vector.broadcast %90 : vector<8x1xf32> to vector<8x32xf32>
      %92 = arith.mulf %84, %91 : vector<8x32xf32>
      %c0_35 = arith.constant 0 : index
      %c0_36 = arith.constant 0 : index
      %93 = vector.load %arg5[%c0_35, %c0_36] : memref<8x32xf32, #tpu.memory_space<vmem>>, vector<8x32xf32>
      tpu.vector_store %arg5[%c0_35, %c0_36], %92 {strides = array<i32>} : memref<8x32xf32, #tpu.memory_space<vmem>>, vector<8x32xf32>,
      %cst_37 = arith.constant 0.000000e+00 : f32
      %c0_38 = arith.constant 0 : index
      %94 = memref.load %arg6[%c0_38] : memref<3xf32, #tpu.memory_space<smem>>
      memref.store %cst_37, %arg6[%c0_38] : memref<3xf32, #tpu.memory_space<smem>>
      %cst_39 = arith.constant 0.000000e+00 : f32
      %c1_40 = arith.constant 1 : index
      %95 = memref.load %arg6[%c1_40] : memref<3xf32, #tpu.memory_space<smem>>
      memref.store %cst_39, %arg6[%c1_40] : memref<3xf32, #tpu.memory_space<smem>>
      %cst_41 = arith.constant 0.000000e+00 : f32
      %c2_42 = arith.constant 2 : index
      %96 = memref.load %arg6[%c2_42] : memref<3xf32, #tpu.memory_space<smem>>
      memref.store %cst_41, %arg6[%c2_42] : memref<3xf32, #tpu.memory_space<smem>>
    } else {
    }
    %c0 = arith.constant 0 : index
    %c0_1 = arith.constant 0 : index
    %3 = vector.load %arg5[%c0, %c0_1] : memref<8x32xf32, #tpu.memory_space<vmem>>, vector<8x32xf32>
    %c0_2 = arith.constant 0 : index
    %c0_3 = arith.constant 0 : index
    %4 = vector.load %arg2[%c0_2, %c0_3] : memref<16x32xf32, #tpu.memory_space<vmem>>, vector<16x32xf32>
    %5 = arith.mulf %4, %4 : vector<16x32xf32>
    %cst = arith.constant dense<0.000000e+00> : vector<16xf32>
    %6 = vector.multi_reduction <add>, %5, %cst [1] : vector<16x32xf32> to vector<16xf32>
    %7 = vector.shape_cast %6 : vector<16xf32> to vector<16x1xf32>
    %cst_4 = arith.constant 9.99999996E-13 : f32
    %8 = vector.broadcast %cst_4 : f32 to vector<16x1xf32>
    %9 = arith.addf %7, %8 : vector<16x1xf32>
    %10 = math.rsqrt %9 : vector<16x1xf32>
    %11 = vector.broadcast %10 : vector<16x1xf32> to vector<16x32xf32>
    %12 = arith.mulf %4, %11 : vector<16x32xf32>
    %cst_5 = arith.constant dense<0.000000e+00> : vector<8x16xf32>
    %13 = tpu.matmul %3, %12, %cst_5 {dimension_numbers = #tpu.dot_dimension_numbers<[1], [1], [0], [0], [0, 0, 1, 0], [], []>} : vector<8x32xf32>, vector<16x32xf32>, vector<8x16xf32> -> vector<8x16xf32>
    %14 = tpu.iota {dimensions = array<i32: 1>} : vector<8x16xi32>
    %c16_i32 = arith.constant 16 : i32
    %15 = arith.muli %arg0, %c16_i32 : i32
    %16 = vector.broadcast %15 : i32 to vector<8x16xi32>
    %17 = arith.addi %14, %16 : vector<8x16xi32>
    %c0_6 = arith.constant 0 : index
    %c0_7 = arith.constant 0 : index
    %18 = vector.load %arg3[%c0_6, %c0_7] : memref<8x1xi32, #tpu.memory_space<vmem>>, vector<8x1xi32>
    %19 = vector.broadcast %18 : vector<8x1xi32> to vector<8x16xi32>
    %20 = arith.cmpi eq, %17, %19 : vector<8x16xi32>
    %c40_i32 = arith.constant 40 : i32
    %21 = vector.broadcast %c40_i32 : i32 to vector<8x16xi32>
    %22 = arith.cmpi slt, %17, %21 : vector<8x16xi32>
    %cst_8 = arith.constant 0.000000e+00 : f32
    %23 = vector.broadcast %cst_8 : f32 to vector<8x16xf32>
    %24 = arith.select %20, %13, %23 : vector<8x16xi1>, vector<8x16xf32>
    %cst_9 = arith.constant dense<0.000000e+00> : vector<8xf32>
    %25 = vector.multi_reduction <add>, %24, %cst_9 [1] : vector<8x16xf32> to vector<8xf32>
    %26 = vector.shape_cast %25 : vector<8xf32> to vector<8x1xf32>
    %cst_10 = arith.constant 1.000000e-01 : f32
    %27 = vector.broadcast %cst_10 : f32 to vector<8x1xf32>
    %28 = arith.subf %26, %27 : vector<8x1xf32>
    %cst_11 = arith.constant -3.200000e+01 : f32
    %29 = vector.broadcast %cst_11 : f32 to vector<8x1xf32>
    %30 = arith.mulf %29, %28 : vector<8x1xf32>
    %31 = math.exp %30 : vector<8x1xf32>
    %cst_12 = arith.constant 0.000000e+00 : f32
    %32 = vector.shape_cast %31 : vector<8x1xf32> to vector<8x1xf32>
    %33 = vector.broadcast %32 : vector<8x1xf32> to vector<8x16xf32>
    %34 = vector.broadcast %cst_12 : f32 to vector<8x16xf32>
    %35 = arith.select %20, %33, %34 : vector<8x16xi1>, vector<8x16xf32>
    %cst_13 = arith.constant dense<0.000000e+00> : vector<16xf32>
    %36 = vector.multi_reduction <add>, %35, %cst_13 [0] : vector<8x16xf32> to vector<16xf32>
    %cst_14 = arith.constant 1.000000e-01 : f32
    %37 = vector.broadcast %cst_14 : f32 to vector<8x16xf32>
    %38 = arith.addf %13, %37 : vector<8x16xf32>
    %cst_15 = arith.constant 3.200000e+01 : f32
    %39 = vector.broadcast %cst_15 : f32 to vector<8x16xf32>
    %40 = arith.mulf %39, %38 : vector<8x16xf32>
    %41 = math.exp %40 : vector<8x16xf32>
    %cst_16 = arith.constant dense<true> : vector<8x16xi1>
    %42 = arith.xori %20, %cst_16 : vector<8x16xi1>
    %43 = arith.andi %42, %22 : vector<8x16xi1>
    %cst_17 = arith.constant 0.000000e+00 : f32
    %44 = vector.broadcast %cst_17 : f32 to vector<8x16xf32>
    %45 = arith.select %43, %41, %44 : vector<8x16xi1>, vector<8x16xf32>
    %cst_18 = arith.constant dense<0.000000e+00> : vector<16xf32>
    %46 = vector.multi_reduction <add>, %45, %cst_18 [0] : vector<8x16xf32> to vector<16xf32>
    %47 = arith.extui %20 : vector<8x16xi1> to vector<8x16xi32>
    %48 = arith.sitofp %47 : vector<8x16xi32> to vector<8x16xf32>
    %cst_19 = arith.constant dense<0.000000e+00> : vector<16xf32>
    %49 = vector.multi_reduction <add>, %48, %cst_19 [0] : vector<8x16xf32> to vector<16xf32>
    %cst_20 = arith.constant 0.000000e+00 : f32
    %50 = vector.broadcast %cst_20 : f32 to vector<16xf32>
    %51 = arith.cmpf ogt, %49, %50 : vector<16xf32>
    %52 = arith.extui %51 : vector<16xi1> to vector<16xi32>
    %53 = arith.sitofp %52 : vector<16xi32> to vector<16xf32>
    %c0_21 = arith.constant 0 : index
    %54 = memref.load %arg6[%c0_21] : memref<3xf32, #tpu.memory_space<smem>>
    %cst_22 = arith.constant 1.000000e+00 : f32
    %55 = vector.broadcast %cst_22 : f32 to vector<16xf32>
    %56 = arith.addf %55, %36 : vector<16xf32>
    %57 = math.log %56 : vector<16xf32>
    %58 = vector.shape_cast %57 : vector<16xf32> to vector<1x16xf32>
    %cst_23 = arith.constant dense<0.000000e+00> : vector<1xf32>
    %59 = vector.multi_reduction <add>, %58, %cst_23 [1] : vector<1x16xf32> to vector<1xf32>
    %60 = vector.shape_cast %59 : vector<1xf32> to vector<1x1xf32>
    %61 = vector.extract %60[0, 0] : f32 from vector<1x1xf32>
    %62 = arith.addf %54, %61 : f32
    %c0_24 = arith.constant 0 : index
    %63 = memref.load %arg6[%c0_24] : memref<3xf32, #tpu.memory_space<smem>>
    memref.store %62, %arg6[%c0_24] : memref<3xf32, #tpu.memory_space<smem>>
    %c1 = arith.constant 1 : index
    %64 = memref.load %arg6[%c1] : memref<3xf32, #tpu.memory_space<smem>>
    %cst_25 = arith.constant 1.000000e+00 : f32
    %65 = vector.broadcast %cst_25 : f32 to vector<16xf32>
    %66 = arith.addf %65, %46 : vector<16xf32>
    %67 = math.log %66 : vector<16xf32>
    %68 = vector.shape_cast %67 : vector<16xf32> to vector<1x16xf32>
    %cst_26 = arith.constant dense<0.000000e+00> : vector<1xf32>
    %69 = vector.multi_reduction <add>, %68, %cst_26 [1] : vector<1x16xf32> to vector<1xf32>
    %70 = vector.shape_cast %69 : vector<1xf32> to vector<1x1xf32>
    %71 = vector.extract %70[0, 0] : f32 from vector<1x1xf32>
    %72 = arith.addf %64, %71 : f32
    %c1_27 = arith.constant 1 : index
    %73 = memref.load %arg6[%c1_27] : memref<3xf32, #tpu.memory_space<smem>>
    memref.store %72, %arg6[%c1_27] : memref<3xf32, #tpu.memory_space<smem>>
    %c2 = arith.constant 2 : index
    %74 = memref.load %arg6[%c2] : memref<3xf32, #tpu.memory_space<smem>>
    %75 = vector.shape_cast %53 : vector<16xf32> to vector<1x16xf32>
    %cst_28 = arith.constant dense<0.000000e+00> : vector<1xf32>
    %76 = vector.multi_reduction <add>, %75, %cst_28 [1] : vector<1x16xf32> to vector<1xf32>
    %77 = vector.shape_cast %76 : vector<1xf32> to vector<1x1xf32>
    %78 = vector.extract %77[0, 0] : f32 from vector<1x1xf32>
    %79 = arith.addf %74, %78 : f32
    %c2_29 = arith.constant 2 : index
    %80 = memref.load %arg6[%c2_29] : memref<3xf32, #tpu.memory_space<smem>>
    memref.store %79, %arg6[%c2_29] : memref<3xf32, #tpu.memory_space<smem>>
    %c2_i32 = arith.constant 2 : i32
    %81 = arith.cmpi eq, %arg0, %c2_i32 : i32
    %82 = arith.extui %81 : i1 to i32
    %c0_i32_30 = arith.constant 0 : i32
    %83 = arith.cmpi ne, %82, %c0_i32_30 : i32
    scf.if %83 {
      %c0_31 = arith.constant 0 : index
      %84 = memref.load %arg6[%c0_31] : memref<3xf32, #tpu.memory_space<smem>>
      %c2_32 = arith.constant 2 : index
      %85 = memref.load %arg6[%c2_32] : memref<3xf32, #tpu.memory_space<smem>>
      %86 = arith.divf %84, %85 : f32
      %c1_33 = arith.constant 1 : index
      %87 = memref.load %arg6[%c1_33] : memref<3xf32, #tpu.memory_space<smem>>
      %cst_34 = arith.constant 4.000000e+01 : f32
      %88 = arith.divf %87, %cst_34 : f32
      %89 = arith.addf %86, %88 : f32
      %c0_35 = arith.constant 0 : index
      %c0_36 = arith.constant 0 : index
      %90 = memref.load %arg4[%c0_35, %c0_36] : memref<1x1xf32, #tpu.memory_space<smem>>
      memref.store %89, %arg4[%c0_35, %c0_36] : memref<1x1xf32, #tpu.memory_space<smem>>
    } else {
    }
    return
  }
  func.func @transform_0(%arg0: i32) -> (i32, i32) {
    %c0_i32 = arith.constant 0 : i32
    %c0_i32_0 = arith.constant 0 : i32
    %c0_i32_1 = arith.constant 0 : i32
    return %c0_i32, %c0_i32_0 : i32, i32
  }
  func.func @transform_1(%arg0: i32) -> (i32, i32) {
    %c0_i32 = arith.constant 0 : i32
    %c0_i32_0 = arith.constant 0 : i32
    return %arg0, %c0_i32 : i32, i32
  }
  func.func @transform_2(%arg0: i32) -> (i32, i32) {
    %c0_i32 = arith.constant 0 : i32
    %c0_i32_0 = arith.constant 0 : i32
    %c0_i32_1 = arith.constant 0 : i32
    return %c0_i32, %c0_i32_0 : i32, i32
  }
  func.func @transform_3(%arg0: i32) -> (i32, i32) {
    %c0_i32 = arith.constant 0 : i32
    %c0_i32_0 = arith.constant 0 : i32
    %c0_i32_1 = arith.constant 0 : i32
    return %c0_i32, %c0_i32_0 : i32, i32
  }
}

</mosaic_0001>

<llo_original>
// kernel: tpu_custom_call.1
$region0: #{tpu_custom_call.1}
  #allocation0 [shape = 'u32[]', space=smem, size = 0x4, offset = 0x4, fixed_abs, tag = 'smem constant byte address 0x4 - core index']
  #allocation1 [shape = 'u32[144,128]{1,0:T(1,128)}', space=vmem, size = 0x12000, scoped, tag = 'internal scratch']
  #allocation2 [shape = 'f32[8,32]{1,0:T(8,128)}', space=vmem, size = 0x1000, scoped, tag = 'scratch operand']
  #allocation3 [shape = 'f32[3]{0:T(128)}', space=smem, size = 0x200, scoped, tag = 'scratch operand']
  %s0 = inlined_call_operand.vmem [shape: f32[8,32], index: 0, kind: input, shape index: {}]
  %s1 = inlined_call_operand.vmem [shape: f32[48,32], index: 1, kind: input, shape index: {}]
  %s2 = inlined_call_operand.vmem [shape: s32[8,1], index: 2, kind: input, shape index: {}]
  %s3 = inlined_call_operand.hbm [shape: f32[1,1], index: 3, kind: output, shape index: {}]
  %s4 = sld [smem:[#allocation0]]
  $region53: #{tpu_custom_call.1} parent=0
    _
  %s6 = ssub.s32 1, %s4
  %s7 = scalar_select 0, %s6, %s4
  $region1: #{tpu_custom_call.1} parent=0
    #allocation4 [shape = 'u8[512]{0}', space=smem, size = 0x200, scoped, tag = 'output window, operand 0, single buffered']
    #allocation5 [shape = 's32[2]{0}', space=sflag, size = 0x8, scoped, tag = 'scoped memory for tpu_custom_call.1']
    %8 = vsyncpa [#allocation5], 0
    loop: start=0, step=1, limit=5
    $region2: #{tpu_custom_call.1} parent=1 // loop_pre_header
      _
    $region3: #{tpu_custom_call.1} parent=1 // loop_header
      %s10 = sphi 0, %s14
      %p11 = scmp.ge.s32.totalorder %s10, 5
      %s18 = sphi 0, %s18
      %s20 = sphi 0, %s18
      %s21 = sphi 0, %s20
      %s35 = sphi 0, %s21
      %s41 = sphi 0, %s43
      %s44 = sphi 0, %s41
      %s45 = sphi 0, %s44
      %s61 = sphi 0, %s45
      %s65 = sphi 0, %s65
      %s67 = sphi 0, %s65
      %s68 = sphi 0, %s67
      %s82 = sphi 0, %s68
      %s86 = sphi 0, %s86
      %s88 = sphi 0, %s86
      %s89 = sphi 0, %s88
      %s103 = sphi 0, %s89
    $region4: #{tpu_custom_call.1} parent=1 // loop_header_branch
      %13 = sbr.rel (%p11) target = $region8
    $region5: #{tpu_custom_call.1} parent=1 // loop_body
      %s15 = ssub.s32 %s10, 1
      %s16 = ssub.s32 %s10, 2
      %s17 = sadd.s32 %s10, 1
      %s19 = sadd.s32 %s18, 1
      %p22 = scmp.eq.s32.totalorder %s10, 2
      %p23 = scmp.ne.s32.totalorder %s18, %s20
      %p24 = scmp.eq.s32.totalorder %s10, 0
      %p25 = por %p23, %p24
      %p26 = scmp.ne.s32.totalorder %s18, %s20
      %p27 = scmp.eq.s32.totalorder %s15, 2
      %p28 = por %p26, %p27
      %p29 = scmp.ne.s32.totalorder %s20, %s21
      %p30 = scmp.eq.s32.totalorder %s15, 0
      %p31 = por %p29, %p30
      %p32 = scmp.ne.s32.totalorder %s20, %s21
      %p33 = scmp.eq.s32.totalorder %s16, 2
      %p34 = por %p32, %p33
      %p36 = scmp.ne.s32.totalorder %s21, %s35
      %p37 = scmp.eq.s32.totalorder %s16, 0
      %p38 = por %p36, %p37
      %s39 = ssub.s32 %s10, %s17
      %p40 = scmp.eq.s32.totalorder %s39, 0
      %s42 = sadd.s32 %s41, 1
      %s43 = scalar_select %p40, %s41, %s42
      %p46 = pneg %p40
      %p47 = scmp.eq.s32.totalorder %s10, 2
      %p48 = por %p46, %p47
      %p49 = scmp.ne.s32.totalorder %s41, %s44
      %p50 = scmp.eq.s32.totalorder %s10, 0
      %p51 = por %p49, %p50
      %p52 = scmp.ne.s32.totalorder %s41, %s44
      %p53 = scmp.eq.s32.totalorder %s15, 2
      %p54 = por %p52, %p53
      %p55 = scmp.ne.s32.totalorder %s44, %s45
      %p56 = scmp.eq.s32.totalorder %s15, 0
      %p57 = por %p55, %p56
      %p58 = scmp.ne.s32.totalorder %s44, %s45
      %p59 = scmp.eq.s32.totalorder %s16, 2
      %p60 = por %p58, %p59
      %p62 = scmp.ne.s32.totalorder %s45, %s61
      %p63 = scmp.eq.s32.totalorder %s16, 0
      %p64 = por %p62, %p63
      %s66 = sadd.s32 %s65, 1
      %p69 = scmp.eq.s32.totalorder %s10, 2
      %p70 = scmp.ne.s32.totalorder %s65, %s67
      %p71 = scmp.eq.s32.totalorder %s10, 0
      %p72 = por %p70, %p71
      %p73 = scmp.ne.s32.totalorder %s65, %s67
      %p74 = scmp.eq.s32.totalorder %s15, 2
      %p75 = por %p73, %p74
      %p76 = scmp.ne.s32.totalorder %s67, %s68
      %p77 = scmp.eq.s32.totalorder %s15, 0
      %p78 = por %p76, %p77
      %p79 = scmp.ne.s32.totalorder %s67, %s68
      %p80 = scmp.eq.s32.totalorder %s16, 2
      %p81 = por %p79, %p80
      %p83 = scmp.ne.s32.totalorder %s68, %s82
      %p84 = scmp.eq.s32.totalorder %s16, 0
      %p85 = por %p83, %p84
      %s87 = sadd.s32 %s86, 1
      %p90 = scmp.eq.s32.totalorder %s10, 2
      %p91 = scmp.ne.s32.totalorder %s86, %s88
      %p92 = scmp.eq.s32.totalorder %s10, 0
      %p93 = por %p91, %p92
      %p94 = scmp.ne.s32.totalorder %s86, %s88
      %p95 = scmp.eq.s32.totalorder %s15, 2
      %p96 = por %p94, %p95
      %p97 = scmp.ne.s32.totalorder %s88, %s89
      %p98 = scmp.eq.s32.totalorder %s15, 0
      %p99 = por %p97, %p98
      %p100 = scmp.ne.s32.totalorder %s88, %s89
      %p101 = scmp.eq.s32.totalorder %s16, 2
      %p102 = por %p100, %p101
      %p104 = scmp.ne.s32.totalorder %s89, %s103
      %p105 = scmp.eq.s32.totalorder %s16, 0
      %p106 = por %p104, %p105
      %p107 = scmp.le.s32.totalorder 1, %s10
      %p108 = scmp.lt.s32.totalorder %s10, 4
      %p109 = pnand %p107, %p108
      %p110 = pneg %p109
      // Predicated region
      $region9: #{tpu_custom_call.1} parent=5 // pred_check
        _
      $region10: #{tpu_custom_call.1} parent=5 // pred_check_branch
        %112 = sbr.rel (%p109) target = $region12
      $region11: #{tpu_custom_call.1} parent=5 // pred_region
        %s113 = ssub.s32 %s10, 1
        // Predicated region
        $region13: #{tpu_custom_call.1} parent=11 // pred_check
          %p114 = pneg %p31
        $region14: #{tpu_custom_call.1} parent=11 // pred_check_branch
          %116 = sbr.rel (%p114) target = $region16
        $region15: #{tpu_custom_call.1} parent=11 // pred_region
          _
        $region16: #{tpu_custom_call.1} parent=11 // pred_fallthru
          _
        // Predicated region
        $region17: #{tpu_custom_call.1} parent=11 // pred_check
          %p117 = pneg %p78
        $region18: #{tpu_custom_call.1} parent=11 // pred_check_branch
          %119 = sbr.rel (%p117) target = $region20
        $region19: #{tpu_custom_call.1} parent=11 // pred_region
          _
        $region20: #{tpu_custom_call.1} parent=11 // pred_fallthru
          _
      $region12: #{tpu_custom_call.1} parent=5 // pred_fallthru
        _
      %p120 = scmp.lt.s32.totalorder %s10, 3
      // Predicated region
      $region21: #{tpu_custom_call.1} parent=5 // pred_check
        %p121 = pneg %p120
      $region22: #{tpu_custom_call.1} parent=5 // pred_check_branch
        %123 = sbr.rel (%p121) target = $region24
      $region23: #{tpu_custom_call.1} parent=5 // pred_region
        // Predicated region
        $region25: #{tpu_custom_call.1} parent=23 // pred_check
          %p124 = pneg %p51
        $region26: #{tpu_custom_call.1} parent=23 // pred_check_branch
          %126 = sbr.rel (%p124) target = $region28
        $region27: #{tpu_custom_call.1} parent=23 // pred_region
          %s127 = smul.u32 2, %s10
          %p128 = scmp.lt.s32.totalorder %s127, 5
          %s129 = scalar_select %p128, %s127, 5
          %s130 = smul.addr %s129, 8
          %s131 = scalar_lea.vmem %s1, %s130
          %s132 = smul.u32 2, %s10
        $region28: #{tpu_custom_call.1} parent=23 // pred_fallthru
          _
      $region24: #{tpu_custom_call.1} parent=5 // pred_fallthru
        _
      %p133 = scmp.le.s32.totalorder 1, %s10
      %p134 = scmp.lt.s32.totalorder %s10, 4
      %p135 = pnand %p133, %p134
      %p136 = pneg %p135
      // Predicated region
      $region29: #{tpu_custom_call.1} parent=5 // pred_check
        _
      $region30: #{tpu_custom_call.1} parent=5 // pred_check_branch
        %138 = sbr.rel (%p135) target = $region32
      $region31: #{tpu_custom_call.1} parent=5 // pred_region
        %s139 = ssub.s32 %s10, 1
        %p140 = pneg %p31
        %p141 = pneg %p28
        %s142 = smul.u32 2, %s15
        %p143 = scmp.lt.s32.totalorder %s142, 5
        %s144 = scalar_select %p143, %s142, 5
        %s145 = smul.addr %s144, 8
        %s146 = scalar_lea.vmem %s1, %s145
        %p147 = pneg %p57
        %p148 = pneg %p54
        %p149 = pneg %p78
        %p150 = pneg %p75
        %p151 = pneg %p99
        %p152 = pneg %p96
        %s153 = smul.u32 2, %s15
        %p154 = scmp.lt.s32.totalorder %s153, 5
        %s155 = scalar_select %p154, %s153, 5
        %s156 = smul.addr %s155, 8
        %s157 = scalar_lea.vmem %s1, %s156
        %s158 = smul.u32 2, %s15
        %p159 = scmp.eq.s32.totalorder %s15, 0
        // Predicated region
        $region33: #{tpu_custom_call.1} parent=31 // pred_check
          %p160 = pneg %p159
        $region34: #{tpu_custom_call.1} parent=31 // pred_check_branch
          %162 = sbr.rel (%p160) target = $region36
        $region35: #{tpu_custom_call.1} parent=31 // pred_region
          %v163 = vld [vmem:[%s0] sm:$0xff]
          %v164 = vmul.f32 %v163, %v163
          %vm165 = vcmask 261120
          %v166 = vsel %vm165, %v164, 0.0
          %167 = vadd.xlane.f32.xlu0 %v166
          %v168 = vpop.xlane.xlu0 %167
          %v169 = vadd.f32 %v168, 1e-12
          %v170 = vrsqrt.pop %v169
          %v171 = vmul.f32 %v163, %v170
          %172 = vst.msk [vmem:[#allocation2] sm:$0xff] %vm165, %v171
          %s173 = scalar_lea.smem [#allocation3], 0
          %174 = sst [smem:[%s173]] 0.0
          %s175 = scalar_lea.smem [#allocation3], 1
          %176 = sst [smem:[%s175]] 0.0
          %s177 = scalar_lea.smem [#allocation3], 2
          %178 = sst [smem:[%s177]] 0.0
        $region36: #{tpu_custom_call.1} parent=31 // pred_fallthru
          _
        %v179 = vld [vmem:[#allocation2] sm:$0xff]
        %v180 = vld [vmem:[%s157] sm:$0xff]
        %v181 = vld [vmem:[%s157 + $0x8] sm:$0xff]
        %v182 = vmul.f32 %v180, %v180
        %v183 = vmul.f32 %v181, %v181
        %vm184 = vcmask 261120
        %v185 = vsel %vm184, %v182, 0.0
        %186 = vadd.xlane.f32.xlu0 %v185
        %v187 = vpop.xlane.xlu0 %186
        %v188 = vsel %vm184, %v183, 0.0
        %189 = vadd.xlane.f32.xlu0 %v188
        %v190 = vpop.xlane.xlu0 %189
        %v191 = vadd.f32 %v187, 1e-12
        %v192 = vadd.f32 %v190, 1e-12
        %v193 = vrsqrt.pop %v191
        %v194 = vrsqrt.pop %v192
        %v195 = vmul.f32 %v180, %v193
        %v196 = vmul.f32 %v181, %v194
        %v198 = vsel %vm184, %v179, 0
        %v201 = vsel %vm184, %v195, 0
        %v204 = vsel %vm184, %v196, 0
        %206 = vmatprep.subr.mxu0 0.0
        %207 = vmatpush1.xpose.msra.mxu0 %v201
        %208 = vmatprep.subr.mxu0 0.0
        %209 = vmatpush1.xpose.msra.mxu0 %v204
        %210 = vmatprep.subr.mxu0 0.0
        %211 = vmatpush1.xpose.msra.mxu0 0.0
        %212 = vmatprep.subr.mxu0 0.0
        %213 = vmatpush1.xpose.msra.mxu0 0.0
        %214 = vmatprep.subr.mxu0 0.0
        %215 = vmatpush1.xpose.msra.mxu0 0.0
        %216 = vmatprep.subr.mxu0 0.0
        %217 = vmatpush1.xpose.msra.mxu0 0.0
        %218 = vmatprep.subr.mxu0 0.0
        %219 = vmatpush1.xpose.msra.mxu0 0.0
        %220 = vmatprep.subr.mxu0 0.0
        %221 = vmatpush1.xpose.msra.mxu0 0.0
        %222 = vmatprep.subr.mxu0 0.0
        %223 = vmatpush1.xpose.msra.mxu0 0.0
        %224 = vmatprep.subr.mxu0 0.0
        %225 = vmatpush1.xpose.msra.mxu0 0.0
        %226 = vmatprep.subr.mxu0 0.0
        %227 = vmatpush1.xpose.msra.mxu0 0.0
        %228 = vmatprep.subr.mxu0 0.0
        %229 = vmatpush1.xpose.msra.mxu0 0.0
        %230 = vmatprep.subr.mxu0 0.0
        %231 = vmatpush1.xpose.msra.mxu0 0.0
        %232 = vmatprep.subr.mxu0 0.0
        %233 = vmatpush1.xpose.msra.mxu0 0.0
        %234 = vmatprep.subr.mxu0 0.0
        %235 = vmatpush1.xpose.msra.mxu0 0.0
        %236 = vmatprep.subr.mxu0 0.0
        %237 = vmatpush1.xpose.msra.mxu0 0.0
        %238 = vmatprep.subr.mxu0 0.0
        %239 = vmatpush1.xpose.msra.mxu0 0.0
        %240 = vmatprep.subr.mxu0 0.0
        %241 = vmatpush1.xpose.msra.mxu0 0.0
        %242 = vmatprep.subr.mxu0 0.0
        %243 = vmatpush1.xpose.msra.mxu0 0.0
        %244 = vmatprep.subr.mxu0 0.0
        %245 = vmatpush1.xpose.msra.mxu0 0.0
        %246 = vmatprep.subr.mxu0 0.0
        %247 = vmatpush1.xpose.msra.mxu0 0.0
        %248 = vmatprep.subr.mxu0 0.0
        %249 = vmatpush1.xpose.msra.mxu0 0.0
        %250 = vmatprep.subr.mxu0 0.0
        %251 = vmatpush1.xpose.msra.mxu0 0.0
        %252 = vmatprep.subr.mxu0 0.0
        %253 = vmatpush1.xpose.msra.mxu0 0.0
        %254 = vmatprep.subr.mxu0 0.0
        %255 = vmatpush1.xpose.msra.mxu0 0.0
        %256 = vmatprep.subr.mxu0 0.0
        %257 = vmatpush1.xpose.msra.mxu0 0.0
        %258 = vmatprep.subr.mxu0 0.0
        %259 = vmatpush1.xpose.msra.mxu0 0.0
        %260 = vmatprep.subr.mxu0 0.0
        %261 = vmatpush1.xpose.msra.mxu0 0.0
        %262 = vmatprep.subr.mxu0 0.0
        %263 = vmatpush1.xpose.msra.mxu0 0.0
        %264 = vmatprep.subr.mxu0 0.0
        %265 = vmatpush1.xpose.msra.mxu0 0.0
        %266 = vmatprep.subr.mxu0 0.0
        %267 = vmatpush1.xpose.msra.mxu0 0.0
        %268 = vmatprep.subr.mxu0 0.0
        %269 = vmatpush1.xpose.msra.mxu0 0.0
        %270 = vmatprep.mubr.f32.mxu0 0.0
        %271 = vmatmul.mubr.f32.gmra.mrb[0].mxu0 %v198
        %v272 = vpop.f32.mrb[0].mxu0
        %v273 = vadd.f32 0.0, %v272
        %v274 = vpop.f32.mrb[0].mxu0
        %275 = vdwg.mxu0
        %v276 = vlaneseq
        %v277 = vand.u32 %v276, 127
        %s278 = smul.u32 %s15, 16
        %v279 = vstv %s278
        %v280 = vadd.s32 %v277, %v279
        %v281 = vld [vmem:[%s2] sm:$0xff]
        %282 = vset.pattern.permute.xlu0 0
        %283 = vperm.xlu0 %282, %v281
        %v284 = vpop.permute.xlu0 %283
        %vm285 = vcmp.eq.s32.totalorder %v280, %v284
        %vm286 = vcmp.lt.s32.totalorder %v280, 40
        %v287 = vsel %vm285, %v273, 0.0
        %vm288 = vcmask 130048
        %v289 = vsel %vm288, %v287, 0.0
        %290 = vadd.xlane.f32.xlu0 %v289
        %v291 = vpop.xlane.xlu0 %290
        %v292 = vsub.f32 %v291, 0.1
        %v293 = vmul.f32 %v292, -32.0
        %v294 = vmul.f32 %v293, 1.442695
        %v295 = vpow.pop %v294
        %v296 = vsel %vm285, %v295, 0.0
        %v297 = vsel %vm288, %v296, 0.0
        %v298 = vrot.slane %v297, 4
        %v299 = vadd.f32 %v297, %v298
        %v300 = vrot.slane %v299, 2
        %v301 = vadd.f32 %v299, %v300
        %v302 = vrot.slane %v301, 1
        %v303 = vadd.f32 %v301, %v302
        %v304 = vadd.f32 %v273, 0.1
        %v305 = vmul.f32 %v304, 32.0
        %v306 = vmul.f32 %v305, 1.442695
        %v307 = vpow.pop %v306
        %vm308 = vmxor %vm285, 1
        %vm309 = vmand %vm308, %vm286
        %v310 = vsel %vm309, %v307, 0.0
        %v311 = vsel %vm288, %v310, 0.0
        %v312 = vrot.slane %v311, 4
        %v313 = vadd.f32 %v311, %v312
        %v314 = vrot.slane %v313, 2
        %v315 = vadd.f32 %v313, %v314
        %v316 = vrot.slane %v315, 1
        %v317 = vadd.f32 %v315, %v316
        %v318 = vsel %vm285, 1, 0
        %v319 = vcvt.s32.f32 %v318
        %v320 = vsel %vm288, %v319, 0.0
        %v321 = vrot.slane %v320, 4
        %v322 = vadd.f32 %v320, %v321
        %v323 = vrot.slane %v322, 2
        %v324 = vadd.f32 %v322, %v323
        %v325 = vrot.slane %v324, 1
        %v326 = vadd.f32 %v324, %v325
        %vm327 = vcmp.gt.f32.partialorder %v326, 0.0
        %v328 = vsel %vm327, 1, 0
        %v329 = vcvt.s32.f32 %v328
        %s330 = sld [smem:[#allocation3]]
        %v331 = vadd.f32 %v303, 1.0
        %v332 = vlog2.pop %v331
        %v333 = vmul.f32 %v332, 0.6931472
        %v334 = vsel %vm288, %v333, 0.0
        %335 = vadd.xlane.f32.xlu0 %v334
        %v336 = vpop.xlane.xlu0 %335
        %s337 = vtos %v336
        %s338 = sadd.f32 %s330, %s337
        %s339 = scalar_lea.smem [#allocation3], 0
        %340 = sst [smem:[%s339]] %s338
        %s341 = sld [smem:[#allocation3 + $0x1]]
        %v342 = vadd.f32 %v317, 1.0
        %v343 = vlog2.pop %v342
        %v344 = vmul.f32 %v343, 0.6931472
        %v345 = vsel %vm288, %v344, 0.0
        %346 = vadd.xlane.f32.xlu0 %v345
        %v347 = vpop.xlane.xlu0 %346
        %s348 = vtos %v347
        %s349 = sadd.f32 %s341, %s348
        %s350 = scalar_lea.smem [#allocation3], 1
        %351 = sst [smem:[%s350]] %s349
        %s352 = sld [smem:[#allocation3 + $0x2]]
        %v353 = vsel %vm288, %v329, 0.0
        %354 = vadd.xlane.f32.xlu0 %v353
        %v355 = vpop.xlane.xlu0 %354
        %s356 = vtos %v355
        %s357 = sadd.f32 %s352, %s356
        %s358 = scalar_lea.smem [#allocation3], 2
        %359 = sst [smem:[%s358]] %s357
        %p360 = scmp.eq.s32.totalorder %s15, 2
        // Predicated region
        $region37: #{tpu_custom_call.1} parent=31 // pred_check
          %p361 = pneg %p360
        $region38: #{tpu_custom_call.1} parent=31 // pred_check_branch
          %363 = sbr.rel (%p361) target = $region40
        $region39: #{tpu_custom_call.1} parent=31 // pred_region
          %s364 = sld [smem:[#allocation3]]
          %s365 = sld [smem:[#allocation3 + $0x2]]
          %v366 = vstv %s365
          %v367 = vrcp.pop %v366
          %s368 = vtos %v367
          %s369 = smul.f32 %s364, %s368
          %s370 = sld [smem:[#allocation3 + $0x1]]
          %v371 = vrcp.pop 40.0
          %s372 = vtos %v371
          %s373 = smul.f32 %s370, %s372
          %s374 = sadd.f32 %s369, %s373
          %s375 = scalar_lea.smem [#allocation4], 0
          %376 = sst [smem:[%s375]] %s374
        $region40: #{tpu_custom_call.1} parent=31 // pred_fallthru
          _
        // Predicated region
        $region41: #{tpu_custom_call.1} parent=31 // pred_check
          %p377 = pneg %p96
        $region42: #{tpu_custom_call.1} parent=31 // pred_check_branch
          %379 = sbr.rel (%p377) target = $region44
        $region43: #{tpu_custom_call.1} parent=31 // pred_region
          %s381 = ssub.s32 16, 16
          %382 = vsyncadd [#allocation5], %s381
          %385 = dma.smem_to_hbm [#allocation4], 16, %s3, [#allocation5]
        $region44: #{tpu_custom_call.1} parent=31 // pred_fallthru
          _
        // Predicated region
        $region45: #{tpu_custom_call.1} parent=31 // pred_check
          %p386 = pneg %p96
        $region46: #{tpu_custom_call.1} parent=31 // pred_check_branch
          %388 = sbr.rel (%p386) target = $region48
        $region47: #{tpu_custom_call.1} parent=31 // pred_region
          %389 = dma.done [#allocation5], 16
        $region48: #{tpu_custom_call.1} parent=31 // pred_fallthru
          _
        %390 = sfence
      $region32: #{tpu_custom_call.1} parent=5 // pred_fallthru
        _
      %p391 = scmp.le.s32.totalorder 2, %s10
      // Predicated region
      $region49: #{tpu_custom_call.1} parent=5 // pred_check
        %p392 = pneg %p391
      $region50: #{tpu_custom_call.1} parent=5 // pred_check_branch
        %394 = sbr.rel (%p392) target = $region52
      $region51: #{tpu_custom_call.1} parent=5 // pred_region
        %s395 = ssub.s32 %s10, 2
      $region52: #{tpu_custom_call.1} parent=5 // pred_fallthru
        _
    $region6: #{tpu_custom_call.1} parent=1 // loop_footer
      %s14 = sadd.s32 1, %s10
    $region7: #{tpu_custom_call.1} parent=1 // loop_footer_branch
      %9 = sbr.rel target = $region3
    $region8: #{tpu_custom_call.1} parent=1 // loop_exit
      _
    %396 = vsyncpa [#allocation5], 1
    %s397 = scalar_lea.sflag [#allocation5], 1
    %398 = vsyncpa %s397, 1

</llo_original>
